<compile_context>
chip_gen: v7x
topology: tpu7x:2x2x1
jax: 0.10.0
libtpu: 0.0.40
codegen_flags: <defaults>
</compile_context>

<pallas_src>
import jax
import jax.numpy as jnp
from jax import lax
from jax.experimental import pallas as pl
from jax.experimental.pallas import tpu as pltpu

_LANE = 128
_SUBLANE = 8


def _round_up(x, m):
    return ((x + m - 1) // m) * m


def _pad2d(a, rows, cols, fill=0.0):
    r, c = a.shape
    return jnp.pad(a, ((0, rows - r), (0, cols - c)), constant_values=fill)


def _bow_kernel(text_ref, emb_ref, w1_ref, b1_ref, w2_ref, b2_ref,
                w3_ref, b3_ref, probs_ref):
    text = text_ref[...]                          # (TB, S) int32 token ids
    tb, seq = text.shape
    vocab = emb_ref.shape[0]                      # padded vocab
    op_dtype = emb_ref.dtype                      # MXU operand dtype (bf16/f32)

    # --- fused embedding gather + bag-of-words sum ---------------------------
    # Token-count matrix accumulated one (small, static) sequence position at
    # a time; live set stays at (TB, V).  Counts accumulate directly in the
    # MXU operand dtype (exact: counts <= S).  Padding tokens are counted but
    # hit an all-zero embedding row (enforced by the wrapper), so no mask
    # compare is needed here.
    lane_ids = lax.broadcasted_iota(jnp.int32, (tb, vocab), 1)   # built once
    counts = jnp.zeros((tb, vocab), op_dtype)
    for j in range(seq):                          # fully unrolled (S static)
        tok = text[:, j:j + 1]                    # (TB, 1) static lane select
        counts = counts + (tok == lane_ids).astype(op_dtype)

    summed = jnp.dot(counts, emb_ref[...],
                     preferred_element_type=jnp.float32)         # (TB, E) f32
    encoded = jnp.tanh(summed)

    # --- tanh MLP + classifier (bf16 MXU operands, f32 accumulation) ---------
    h1 = jnp.tanh(jnp.dot(encoded.astype(op_dtype), w1_ref[...],
                          preferred_element_type=jnp.float32) + b1_ref[...])
    h2 = jnp.tanh(jnp.dot(h1.astype(op_dtype), w2_ref[...],
                          preferred_element_type=jnp.float32) + b2_ref[...])
    logits = (jnp.dot(h2.astype(op_dtype), w3_ref[...],
                      preferred_element_type=jnp.float32) + b3_ref[...])
    # padded label columns carry bias = -1e30 (f32) -> exp() underflows to 0.

    # --- softmax (max-stabilized; reciprocal on the EUP) ----------------------
    m = jnp.max(logits, axis=-1, keepdims=True)
    e = jnp.exp(logits - m)
    inv = pl.reciprocal(jnp.sum(e, axis=-1, keepdims=True), approx=True)
    probs_ref[...] = (e * inv).astype(probs_ref.dtype)


def _pick_batch_tile(batch):
    pb8 = _round_up(batch, _SUBLANE)
    if pb8 <= _SUBLANE:
        return _SUBLANE
    # >= 2 grid steps whenever the batch permits (v7x: 2 TensorCores share the
    # "parallel" axis), capped at 256 rows to fill the v6e/v7x 256-wide MXU.
    return max(_SUBLANE, min(256, _round_up(pb8 // 2, _SUBLANE)))


def bow_text_classifier_forward(text, params, padding_idx, *,
                                batch_tile=None,
                                operand_dtype=jnp.bfloat16):
    """text: (B, S) int32 token ids. Returns {'probs': (B, num_labels) f32}."""
    emb_table, w1, b1, w2, b2, w3, b3 = params

    B, S = text.shape
    V, E = emb_table.shape
    H = w1.shape[1]
    Fh = w2.shape[1]
    L = w3.shape[1]

    # lane-dense padded feature dims (zero padding keeps the math exact)
    Vp = _round_up(V, _LANE)
    Ep = _round_up(E, _LANE)
    Hp = _round_up(H, _LANE)
    Fp = _round_up(Fh, _LANE)
    Lp = _round_up(L, _LANE)

    TB = (_round_up(batch_tile, _SUBLANE) if batch_tile
          else _pick_batch_tile(B))
    pB = _round_up(B, TB)

    # MXU operands in bf16 (f32 accumulation stays); biases stay f32 (added
    # after the f32-accumulating matmul).  The padding row of the embedding
    # table is forced to zero so padding tokens need no in-kernel mask.
    emb_op = emb_table.at[padding_idx].set(0.0).astype(operand_dtype)
    w1_op, w2_op, w3_op = (w.astype(operand_dtype) for w in (w1, w2, w3))

    textp = jnp.pad(text, ((0, pB - B), (0, 0)), constant_values=padding_idx)
    embp = _pad2d(emb_op, Vp, Ep)
    w1p = _pad2d(w1_op, Ep, Hp)
    w2p = _pad2d(w2_op, Hp, Fp)
    w3p = _pad2d(w3_op, Fp, Lp)
    b1p = _pad2d(jnp.asarray(b1, jnp.float32).reshape(1, -1), 1, Hp)
    b2p = _pad2d(jnp.asarray(b2, jnp.float32).reshape(1, -1), 1, Fp)
    b3p = jnp.full((1, Lp), -1e30, jnp.float32).at[:, :L].set(
        jnp.asarray(b3, jnp.float32).reshape(1, -1))

    # explicit VMEM budget: needed on v5e (16 MiB scoped default), <= 48 MiB
    # to leave pipeline headroom inside v7x's 64 MiB physical VMEM.
    it = jnp.dtype(operand_dtype).itemsize
    tile_bytes = (TB * S * 4 + Vp * Ep * it + Ep * Hp * it + Hp * Fp * it
                  + Fp * Lp * it + (Hp + Fp + Lp) * 4 + TB * Lp * 4)
    act_bytes = TB * (Vp + Ep + Hp + Fp + 2 * Lp) * 4
    vmem_limit = int(min(max(2 * tile_bytes + act_bytes + (4 << 20),
                             32 << 20), 48 << 20))

    full = lambda shape: pl.BlockSpec(shape, lambda i: (0, 0))

    out = pl.pallas_call(
        _bow_kernel,
        out_shape=jax.ShapeDtypeStruct((pB, Lp), jnp.float32),
        grid_spec=pltpu.PrefetchScalarGridSpec(
            num_scalar_prefetch=0,
            grid=(pB // TB,),
            in_specs=[
                pl.BlockSpec((TB, S), lambda i: (i, 0)),   # token ids
                full((Vp, Ep)),                            # embedding table
                full((Ep, Hp)), full((1, Hp)),             # fc1
                full((Hp, Fp)), full((1, Fp)),             # fc2
                full((Fp, Lp)), full((1, Lp)),             # classifier
            ],
            out_specs=pl.BlockSpec((TB, Lp), lambda i: (i, 0)),
        ),
        compiler_params=pltpu.CompilerParams(
            dimension_semantics=("parallel",),
            vmem_limit_bytes=vmem_limit,
        ),
    )(textp, embp, w1p, b1p, w2p, b2p, w3p, b3p)

    # TODO(synk): optional cross-entropy loss branch (label is not None) is
    # not implemented in-kernel; only the probs output path is produced here.
    return {"probs": out[:B, :L]}


def init_params(key, dict_dim, emb_dim, hidden_dim, fc_hidden_dim, num_labels):
    assert emb_dim == hidden_dim, "bag-of-words sum feeds fc1 directly"
    k = jax.random.split(key, 7)
    padding_idx = dict_dim - 1

    emb = 0.1 * jax.random.normal(k[0], (dict_dim, emb_dim), jnp.float32)
    emb = emb.at[padding_idx].set(0.0)            # nn.Embedding padding_idx

    w1 = 0.1 * jax.random.normal(k[1], (hidden_dim, hidden_dim), jnp.float32)
    b1 = 0.1 * jax.random.normal(k[2], (1, hidden_dim), jnp.float32)
    w2 = 0.1 * jax.random.normal(k[3], (hidden_dim, fc_hidden_dim), jnp.float32)
    b2 = 0.1 * jax.random.normal(k[4], (1, fc_hidden_dim), jnp.float32)
    w3 = 0.1 * jax.random.normal(k[5], (fc_hidden_dim, num_labels), jnp.float32)
    b3 = 0.1 * jax.random.normal(k[6], (1, num_labels), jnp.float32)
    return (emb, w1, b1, w2, b2, w3, b3), padding_idx


if __name__ == "__main__":
    # Small shapes consistent with the module's forward.
    dict_dim = 64
    emb_dim = hidden_dim = 32
    fc_hidden_dim = 16
    num_labels = 2
    batch, seq = 4, 8

    key = jax.random.PRNGKey(0)
    pkey, tkey = jax.random.split(key)

    params, padding_idx = init_params(
        pkey, dict_dim, emb_dim, hidden_dim, fc_hidden_dim, num_labels)

    # token ids in [0, dict_dim); force some padding tokens at the tail
    text = jax.random.randint(tkey, (batch, seq), 0, dict_dim - 1, jnp.int32)
    text = text.at[:, -2:].set(padding_idx)

    out = bow_text_classifier_forward(text, params, padding_idx)
    probs = jax.block_until_ready(out["probs"])

    # plain-JAX reference using the same bf16-rounded MXU operands the kernel
    # uses, so the check isolates kernel correctness from the dtype choice.
    emb_table, w1, b1, w2, b2, w3, b3 = params
    bf = lambda a: a.astype(jnp.bfloat16).astype(jnp.float32)
    embedded = jnp.take(bf(emb_table), text, axis=0)
    mask = (text != padding_idx).astype(jnp.float32)
    enc = jnp.tanh(jnp.sum(embedded * mask[:, :, None], axis=1))
    h1 = jnp.tanh(enc @ bf(w1) + b1)
    h2 = jnp.tanh(h1 @ bf(w2) + b2)
    logits = h2 @ bf(w3) + b3
    ref = jax.nn.softmax(logits, axis=-1)

    assert probs.shape == (batch, num_labels), probs.shape
    # tolerance covers bf16 activation casts + EUP approximate reciprocal
    assert jnp.allclose(probs, ref, atol=1e-2, rtol=1e-2), (probs, ref)
    assert bool(jnp.all(jnp.isfinite(probs)))

    print("KERNEL_OK")
</pallas_src>

<mosaic_0001>
module attributes {stable_mosaic.version = 11 : i64} {
  func.func @_bow_kernel(%arg0: i32, %arg1: memref<8x8xi32, #tpu.memory_space<vmem>>, %arg2: memref<128x128xbf16, #tpu.memory_space<vmem>>, %arg3: memref<128x128xbf16, #tpu.memory_space<vmem>>, %arg4: memref<1x128xf32, #tpu.memory_space<vmem>>, %arg5: memref<128x128xbf16, #tpu.memory_space<vmem>>, %arg6: memref<1x128xf32, #tpu.memory_space<vmem>>, %arg7: memref<128x128xbf16, #tpu.memory_space<vmem>>, %arg8: memref<1x128xf32, #tpu.memory_space<vmem>>, %arg9: memref<8x128xf32, #tpu.memory_space<vmem>>) attributes {dimension_semantics = [#tpu.dimension_semantics<parallel>], iteration_bounds = array<i64: 1>, scalar_prefetch = 0 : i64, scratch_operands = 0 : i64, tpu.core_type = #tpu.core_type<tc>, window_params = [{transform_indices = @transform_0, window_bounds = array<i64: 8, 8>}, {pipeline_mode = #tpu.pipeline_mode<synchronous>, transform_indices = @transform_1, window_bounds = array<i64: 128, 128>}, {pipeline_mode = #tpu.pipeline_mode<synchronous>, transform_indices = @transform_2, window_bounds = array<i64: 128, 128>}, {pipeline_mode = #tpu.pipeline_mode<synchronous>, transform_indices = @transform_3, window_bounds = array<i64: 1, 128>}, {pipeline_mode = #tpu.pipeline_mode<synchronous>, transform_indices = @transform_4, window_bounds = array<i64: 128, 128>}, {pipeline_mode = #tpu.pipeline_mode<synchronous>, transform_indices = @transform_5, window_bounds = array<i64: 1, 128>}, {pipeline_mode = #tpu.pipeline_mode<synchronous>, transform_indices = @transform_6, window_bounds = array<i64: 128, 128>}, {pipeline_mode = #tpu.pipeline_mode<synchronous>, transform_indices = @transform_7, window_bounds = array<i64: 1, 128>}, {transform_indices = @transform_8, window_bounds = array<i64: 8, 128>}]} {
    %c0 = arith.constant 0 : index
    %c0_0 = arith.constant 0 : index
    %0 = vector.load %arg1[%c0, %c0_0] : memref<8x8xi32, #tpu.memory_space<vmem>>, vector<8x8xi32>
    %1 = tpu.iota {dimensions = array<i32: 1>} : vector<8x128xi32>
    %cst = arith.constant 0.000000e+00 : bf16
    %2 = vector.broadcast %cst : bf16 to vector<8x128xbf16>
    %3 = vector.extract_strided_slice %0 {offsets = [0, 0], sizes = [8, 1], strides = [1, 1]} : vector<8x8xi32> to vector<8x1xi32>
    %4 = vector.broadcast %3 : vector<8x1xi32> to vector<8x128xi32>
    %5 = arith.cmpi eq, %4, %1 : vector<8x128xi32>
    %6 = arith.extui %5 : vector<8x128xi1> to vector<8x128xi32>
    %7 = arith.sitofp %6 : vector<8x128xi32> to vector<8x128xf32>
    %8 = arith.truncf %7 : vector<8x128xf32> to vector<8x128xbf16>
    %9 = arith.addf %2, %8 : vector<8x128xbf16>
    %10 = vector.extract_strided_slice %0 {offsets = [0, 1], sizes = [8, 1], strides = [1, 1]} : vector<8x8xi32> to vector<8x1xi32>
    %11 = vector.broadcast %10 : vector<8x1xi32> to vector<8x128xi32>
    %12 = arith.cmpi eq, %11, %1 : vector<8x128xi32>
    %13 = arith.extui %12 : vector<8x128xi1> to vector<8x128xi32>
    %14 = arith.sitofp %13 : vector<8x128xi32> to vector<8x128xf32>
    %15 = arith.truncf %14 : vector<8x128xf32> to vector<8x128xbf16>
    %16 = arith.addf %9, %15 : vector<8x128xbf16>
    %17 = vector.extract_strided_slice %0 {offsets = [0, 2], sizes = [8, 1], strides = [1, 1]} : vector<8x8xi32> to vector<8x1xi32>
    %18 = vector.broadcast %17 : vector<8x1xi32> to vector<8x128xi32>
    %19 = arith.cmpi eq, %18, %1 : vector<8x128xi32>
    %20 = arith.extui %19 : vector<8x128xi1> to vector<8x128xi32>
    %21 = arith.sitofp %20 : vector<8x128xi32> to vector<8x128xf32>
    %22 = arith.truncf %21 : vector<8x128xf32> to vector<8x128xbf16>
    %23 = arith.addf %16, %22 : vector<8x128xbf16>
    %24 = vector.extract_strided_slice %0 {offsets = [0, 3], sizes = [8, 1], strides = [1, 1]} : vector<8x8xi32> to vector<8x1xi32>
    %25 = vector.broadcast %24 : vector<8x1xi32> to vector<8x128xi32>
    %26 = arith.cmpi eq, %25, %1 : vector<8x128xi32>
    %27 = arith.extui %26 : vector<8x128xi1> to vector<8x128xi32>
    %28 = arith.sitofp %27 : vector<8x128xi32> to vector<8x128xf32>
    %29 = arith.truncf %28 : vector<8x128xf32> to vector<8x128xbf16>
    %30 = arith.addf %23, %29 : vector<8x128xbf16>
    %31 = vector.extract_strided_slice %0 {offsets = [0, 4], sizes = [8, 1], strides = [1, 1]} : vector<8x8xi32> to vector<8x1xi32>
    %32 = vector.broadcast %31 : vector<8x1xi32> to vector<8x128xi32>
    %33 = arith.cmpi eq, %32, %1 : vector<8x128xi32>
    %34 = arith.extui %33 : vector<8x128xi1> to vector<8x128xi32>
    %35 = arith.sitofp %34 : vector<8x128xi32> to vector<8x128xf32>
    %36 = arith.truncf %35 : vector<8x128xf32> to vector<8x128xbf16>
    %37 = arith.addf %30, %36 : vector<8x128xbf16>
    %38 = vector.extract_strided_slice %0 {offsets = [0, 5], sizes = [8, 1], strides = [1, 1]} : vector<8x8xi32> to vector<8x1xi32>
    %39 = vector.broadcast %38 : vector<8x1xi32> to vector<8x128xi32>
    %40 = arith.cmpi eq, %39, %1 : vector<8x128xi32>
    %41 = arith.extui %40 : vector<8x128xi1> to vector<8x128xi32>
    %42 = arith.sitofp %41 : vector<8x128xi32> to vector<8x128xf32>
    %43 = arith.truncf %42 : vector<8x128xf32> to vector<8x128xbf16>
    %44 = arith.addf %37, %43 : vector<8x128xbf16>
    %45 = vector.extract_strided_slice %0 {offsets = [0, 6], sizes = [8, 1], strides = [1, 1]} : vector<8x8xi32> to vector<8x1xi32>
    %46 = vector.broadcast %45 : vector<8x1xi32> to vector<8x128xi32>
    %47 = arith.cmpi eq, %46, %1 : vector<8x128xi32>
    %48 = arith.extui %47 : vector<8x128xi1> to vector<8x128xi32>
    %49 = arith.sitofp %48 : vector<8x128xi32> to vector<8x128xf32>
    %50 = arith.truncf %49 : vector<8x128xf32> to vector<8x128xbf16>
    %51 = arith.addf %44, %50 : vector<8x128xbf16>
    %52 = vector.extract_strided_slice %0 {offsets = [0, 7], sizes = [8, 1], strides = [1, 1]} : vector<8x8xi32> to vector<8x1xi32>
    %53 = vector.broadcast %52 : vector<8x1xi32> to vector<8x128xi32>
    %54 = arith.cmpi eq, %53, %1 : vector<8x128xi32>
    %55 = arith.extui %54 : vector<8x128xi1> to vector<8x128xi32>
    %56 = arith.sitofp %55 : vector<8x128xi32> to vector<8x128xf32>
    %57 = arith.truncf %56 : vector<8x128xf32> to vector<8x128xbf16>
    %58 = arith.addf %51, %57 : vector<8x128xbf16>
    %c0_1 = arith.constant 0 : index
    %c0_2 = arith.constant 0 : index
    %59 = vector.load %arg2[%c0_1, %c0_2] : memref<128x128xbf16, #tpu.memory_space<vmem>>, vector<128x128xbf16>
    %cst_3 = arith.constant dense<0.000000e+00> : vector<8x128xf32>
    %60 = tpu.matmul %58, %59, %cst_3 {dimension_numbers = #tpu.dot_dimension_numbers<[1], [0], [0], [1], [0, 0, 1, 1], [], []>} : vector<8x128xbf16>, vector<128x128xbf16>, vector<8x128xf32> -> vector<8x128xf32>
    %61 = math.tanh %60 : vector<8x128xf32>
    %62 = arith.truncf %61 : vector<8x128xf32> to vector<8x128xbf16>
    %c0_4 = arith.constant 0 : index
    %c0_5 = arith.constant 0 : index
    %63 = vector.load %arg3[%c0_4, %c0_5] : memref<128x128xbf16, #tpu.memory_space<vmem>>, vector<128x128xbf16>
    %cst_6 = arith.constant dense<0.000000e+00> : vector<8x128xf32>
    %64 = tpu.matmul %62, %63, %cst_6 {dimension_numbers = #tpu.dot_dimension_numbers<[1], [0], [0], [1], [0, 0, 1, 1], [], []>} : vector<8x128xbf16>, vector<128x128xbf16>, vector<8x128xf32> -> vector<8x128xf32>
    %c0_7 = arith.constant 0 : index
    %c0_8 = arith.constant 0 : index
    %65 = vector.load %arg4[%c0_7, %c0_8] : memref<1x128xf32, #tpu.memory_space<vmem>>, vector<1x128xf32>
    %66 = vector.broadcast %65 : vector<1x128xf32> to vector<8x128xf32>
    %67 = arith.addf %64, %66 : vector<8x128xf32>
    %68 = math.tanh %67 : vector<8x128xf32>
    %69 = arith.truncf %68 : vector<8x128xf32> to vector<8x128xbf16>
    %c0_9 = arith.constant 0 : index
    %c0_10 = arith.constant 0 : index
    %70 = vector.load %arg5[%c0_9, %c0_10] : memref<128x128xbf16, #tpu.memory_space<vmem>>, vector<128x128xbf16>
    %cst_11 = arith.constant dense<0.000000e+00> : vector<8x128xf32>
    %71 = tpu.matmul %69, %70, %cst_11 {dimension_numbers = #tpu.dot_dimension_numbers<[1], [0], [0], [1], [0, 0, 1, 1], [], []>} : vector<8x128xbf16>, vector<128x128xbf16>, vector<8x128xf32> -> vector<8x128xf32>
    %c0_12 = arith.constant 0 : index
    %c0_13 = arith.constant 0 : index
    %72 = vector.load %arg6[%c0_12, %c0_13] : memref<1x128xf32, #tpu.memory_space<vmem>>, vector<1x128xf32>
    %73 = vector.broadcast %72 : vector<1x128xf32> to vector<8x128xf32>
    %74 = arith.addf %71, %73 : vector<8x128xf32>
    %75 = math.tanh %74 : vector<8x128xf32>
    %76 = arith.truncf %75 : vector<8x128xf32> to vector<8x128xbf16>
    %c0_14 = arith.constant 0 : index
    %c0_15 = arith.constant 0 : index
    %77 = vector.load %arg7[%c0_14, %c0_15] : memref<128x128xbf16, #tpu.memory_space<vmem>>, vector<128x128xbf16>
    %cst_16 = arith.constant dense<0.000000e+00> : vector<8x128xf32>
    %78 = tpu.matmul %76, %77, %cst_16 {dimension_numbers = #tpu.dot_dimension_numbers<[1], [0], [0], [1], [0, 0, 1, 1], [], []>} : vector<8x128xbf16>, vector<128x128xbf16>, vector<8x128xf32> -> vector<8x128xf32>
    %c0_17 = arith.constant 0 : index
    %c0_18 = arith.constant 0 : index
    %79 = vector.load %arg8[%c0_17, %c0_18] : memref<1x128xf32, #tpu.memory_space<vmem>>, vector<1x128xf32>
    %80 = vector.broadcast %79 : vector<1x128xf32> to vector<8x128xf32>
    %81 = arith.addf %78, %80 : vector<8x128xf32>
    %cst_19 = arith.constant dense<0xFF800000> : vector<8xf32>
    %82 = vector.multi_reduction <maximumf>, %81, %cst_19 [1] : vector<8x128xf32> to vector<8xf32>
    %83 = vector.shape_cast %82 : vector<8xf32> to vector<8x1xf32>
    %84 = vector.broadcast %83 : vector<8x1xf32> to vector<8x128xf32>
    %85 = arith.subf %81, %84 : vector<8x128xf32>
    %86 = math.exp %85 : vector<8x128xf32>
    %cst_20 = arith.constant dense<0.000000e+00> : vector<8xf32>
    %87 = vector.multi_reduction <add>, %86, %cst_20 [1] : vector<8x128xf32> to vector<8xf32>
    %88 = vector.shape_cast %87 : vector<8xf32> to vector<8x1xf32>
    %89 = tpu.reciprocal %88 {approx = true} : vector<8x1xf32> -> vector<8x1xf32>
    %90 = vector.broadcast %89 : vector<8x1xf32> to vector<8x128xf32>
    %91 = arith.mulf %86, %90 : vector<8x128xf32>
    %c0_21 = arith.constant 0 : index
    %c0_22 = arith.constant 0 : index
    %92 = vector.load %arg9[%c0_21, %c0_22] : memref<8x128xf32, #tpu.memory_space<vmem>>, vector<8x128xf32>
    tpu.vector_store %arg9[%c0_21, %c0_22], %91 {strides = array<i32>} : memref<8x128xf32, #tpu.memory_space<vmem>>, vector<8x128xf32>,
    return
  }
  func.func @transform_0(%arg0: i32) -> (i32, i32) {
    %c0_i32 = arith.constant 0 : i32
    %c0_i32_0 = arith.constant 0 : i32
    return %arg0, %c0_i32 : i32, i32
  }
  func.func @transform_1(%arg0: i32) -> (i32, i32) {
    %c0_i32 = arith.constant 0 : i32
    %c0_i32_0 = arith.constant 0 : i32
    %c0_i32_1 = arith.constant 0 : i32
    return %c0_i32, %c0_i32_0 : i32, i32
  }
  func.func @transform_2(%arg0: i32) -> (i32, i32) {
    %c0_i32 = arith.constant 0 : i32
    %c0_i32_0 = arith.constant 0 : i32
    %c0_i32_1 = arith.constant 0 : i32
    return %c0_i32, %c0_i32_0 : i32, i32
  }
  func.func @transform_3(%arg0: i32) -> (i32, i32) {
    %c0_i32 = arith.constant 0 : i32
    %c0_i32_0 = arith.constant 0 : i32
    %c0_i32_1 = arith.constant 0 : i32
    return %c0_i32, %c0_i32_0 : i32, i32
  }
  func.func @transform_4(%arg0: i32) -> (i32, i32) {
    %c0_i32 = arith.constant 0 : i32
    %c0_i32_0 = arith.constant 0 : i32
    %c0_i32_1 = arith.constant 0 : i32
    return %c0_i32, %c0_i32_0 : i32, i32
  }
  func.func @transform_5(%arg0: i32) -> (i32, i32) {
    %c0_i32 = arith.constant 0 : i32
    %c0_i32_0 = arith.constant 0 : i32
    %c0_i32_1 = arith.constant 0 : i32
    return %c0_i32, %c0_i32_0 : i32, i32
  }
  func.func @transform_6(%arg0: i32) -> (i32, i32) {
    %c0_i32 = arith.constant 0 : i32
    %c0_i32_0 = arith.constant 0 : i32
    %c0_i32_1 = arith.constant 0 : i32
    return %c0_i32, %c0_i32_0 : i32, i32
  }
  func.func @transform_7(%arg0: i32) -> (i32, i32) {
    %c0_i32 = arith.constant 0 : i32
    %c0_i32_0 = arith.constant 0 : i32
    %c0_i32_1 = arith.constant 0 : i32
    return %c0_i32, %c0_i32_0 : i32, i32
  }
  func.func @transform_8(%arg0: i32) -> (i32, i32) {
    %c0_i32 = arith.constant 0 : i32
    %c0_i32_0 = arith.constant 0 : i32
    return %arg0, %c0_i32 : i32, i32
  }
}

</mosaic_0001>

<llo_original>
// kernel: tpu_custom_call.1
$region0: #{tpu_custom_call.1}
  #allocation0 [shape = 'u32[]', space=smem, size = 0x4, offset = 0x4, fixed_abs, tag = 'smem constant byte address 0x4 - core index']
  #allocation1 [shape = 'u32[144,128]{1,0:T(1,128)}', space=vmem, size = 0x12000, scoped, tag = 'internal scratch']
  %s0 = inlined_call_operand.hbm [shape: s32[8,8], index: 0, kind: input, shape index: {}]
  %s1 = inlined_call_operand.hbm [shape: bf16[128,128], index: 1, kind: input, shape index: {}]
  %s2 = inlined_call_operand.hbm [shape: bf16[128,128], index: 2, kind: input, shape index: {}]
  %s3 = inlined_call_operand.vmem [shape: f32[1,128], index: 3, kind: input, shape index: {}]
  %s4 = inlined_call_operand.hbm [shape: bf16[128,128], index: 4, kind: input, shape index: {}]
  %s5 = inlined_call_operand.vmem [shape: f32[1,128], index: 5, kind: input, shape index: {}]
  %s6 = inlined_call_operand.hbm [shape: bf16[128,128], index: 6, kind: input, shape index: {}]
  %s7 = inlined_call_operand.vmem [shape: f32[1,128], index: 7, kind: input, shape index: {}]
  %s8 = inlined_call_operand.hbm [shape: f32[8,128], index: 8, kind: output, shape index: {}]
  %s9 = sld [smem:[#allocation0]]
  $region62: #{tpu_custom_call.1} parent=0
    _
  %s11 = ssub.s32 1, %s9
  %s12 = scalar_select 0, %s11, %s9
  $region1: #{tpu_custom_call.1} parent=0
    #allocation2 [shape = 'u8[4096]{0}', space=vmem, size = 0x1000, scoped, tag = 'input window, operand 0, single buffered']
    #allocation3 [shape = 's32[1]{0}', space=sflag, size = 0x4, scoped, tag = 'scoped memory for tpu_custom_call.1']
    #allocation4 [shape = 's32[1]{0}', space=sflag, size = 0x4, scoped, tag = 'scoped memory for tpu_custom_call.1']
    #allocation5 [shape = 'u8[32768]{0}', space=vmem, size = 0x8000, scoped, tag = 'input window, operand 1, single buffered']
    #allocation6 [shape = 's32[1]{0}', space=sflag, size = 0x4, scoped, tag = 'scoped memory for tpu_custom_call.1']
    #allocation7 [shape = 'u8[32768]{0}', space=vmem, size = 0x8000, scoped, tag = 'input window, operand 2, single buffered']
    #allocation8 [shape = 'u8[32768]{0}', space=vmem, size = 0x8000, scoped, tag = 'input window, operand 4, single buffered']
    #allocation9 [shape = 's32[1]{0}', space=sflag, size = 0x4, scoped, tag = 'scoped memory for tpu_custom_call.1']
    #allocation10 [shape = 'u8[32768]{0}', space=vmem, size = 0x8000, scoped, tag = 'input window, operand 6, single buffered']
    #allocation11 [shape = 'u8[4096]{0}', space=vmem, size = 0x1000, scoped, tag = 'output window, operand 0, single buffered']
    %13 = vsyncpa [#allocation3], 0
    %14 = vsyncpa [#allocation6], 0
    %15 = vsyncpa [#allocation9], 0
    %16 = vsyncpa [#allocation4], 0
    // Predicated region
    $region2: #{tpu_custom_call.1} parent=1 // pred_check
      _
    $region3: #{tpu_custom_call.1} parent=1 // pred_check_branch
      %18 = sbr.rel (0) target = $region5
    $region4: #{tpu_custom_call.1} parent=1 // pred_region
      %s20 = ssub.s32 128, 128
      %21 = vsyncadd [#allocation3], %s20
      %s23 = sshll.u32 [#allocation2], 4
      %s24 = int_to_ptr.vmem [resolvable:$true] %s23
      %26 = dma.hbm_to_vmem [thread:$0]  %s0, 128, %s24, [#allocation3]
    $region5: #{tpu_custom_call.1} parent=1 // pred_fallthru
      _
    // Predicated region
    $region6: #{tpu_custom_call.1} parent=1 // pred_check
      _
    $region7: #{tpu_custom_call.1} parent=1 // pred_check_branch
      %28 = sbr.rel (0) target = $region9
    $region8: #{tpu_custom_call.1} parent=1 // pred_region
      %s30 = ssub.s32 1024, 1024
      %31 = vsyncadd [#allocation6], %s30
      %s32 = sshll.u32 [#allocation5], 4
      %s33 = int_to_ptr.vmem [resolvable:$true] %s32
      %38 = dma.hbm_to_vmem [thread:$0]  %s1, 1024, %s33, [#allocation6], 64, 64, 4
    $region9: #{tpu_custom_call.1} parent=1 // pred_fallthru
      _
    // Predicated region
    $region10: #{tpu_custom_call.1} parent=1 // pred_check
      _
    $region11: #{tpu_custom_call.1} parent=1 // pred_check_branch
      %40 = sbr.rel (0) target = $region13
    $region12: #{tpu_custom_call.1} parent=1 // pred_region
      %s42 = ssub.s32 1024, 1024
      %43 = vsyncadd [#allocation6], %s42
      %s44 = sshll.u32 [#allocation7], 4
      %s45 = int_to_ptr.vmem [resolvable:$true] %s44
      %50 = dma.hbm_to_vmem [thread:$0]  %s2, 1024, %s45, [#allocation6], 64, 64, 4
    $region13: #{tpu_custom_call.1} parent=1 // pred_fallthru
      _
    // Predicated region
    $region14: #{tpu_custom_call.1} parent=1 // pred_check
      _
    $region15: #{tpu_custom_call.1} parent=1 // pred_check_branch
      %52 = sbr.rel (0) target = $region17
    $region16: #{tpu_custom_call.1} parent=1 // pred_region
      _
    $region17: #{tpu_custom_call.1} parent=1 // pred_fallthru
      _
    // Predicated region
    $region18: #{tpu_custom_call.1} parent=1 // pred_check
      _
    $region19: #{tpu_custom_call.1} parent=1 // pred_check_branch
      %54 = sbr.rel (0) target = $region21
    $region20: #{tpu_custom_call.1} parent=1 // pred_region
      %s56 = ssub.s32 1024, 1024
      %57 = vsyncadd [#allocation9], %s56
      %s58 = sshll.u32 [#allocation8], 4
      %s59 = int_to_ptr.vmem [resolvable:$true] %s58
      %64 = dma.hbm_to_vmem [thread:$0]  %s4, 1024, %s59, [#allocation9], 64, 64, 4
    $region21: #{tpu_custom_call.1} parent=1 // pred_fallthru
      _
    // Predicated region
    $region22: #{tpu_custom_call.1} parent=1 // pred_check
      _
    $region23: #{tpu_custom_call.1} parent=1 // pred_check_branch
      %66 = sbr.rel (0) target = $region25
    $region24: #{tpu_custom_call.1} parent=1 // pred_region
      _
    $region25: #{tpu_custom_call.1} parent=1 // pred_fallthru
      _
    // Predicated region
    $region26: #{tpu_custom_call.1} parent=1 // pred_check
      _
    $region27: #{tpu_custom_call.1} parent=1 // pred_check_branch
      %68 = sbr.rel (0) target = $region29
    $region28: #{tpu_custom_call.1} parent=1 // pred_region
      %s70 = ssub.s32 1024, 1024
      %71 = vsyncadd [#allocation9], %s70
      %s72 = sshll.u32 [#allocation10], 4
      %s73 = int_to_ptr.vmem [resolvable:$true] %s72
      %78 = dma.hbm_to_vmem [thread:$0]  %s6, 1024, %s73, [#allocation9], 64, 64, 4
    $region29: #{tpu_custom_call.1} parent=1 // pred_fallthru
      _
    // Predicated region
    $region30: #{tpu_custom_call.1} parent=1 // pred_check
      _
    $region31: #{tpu_custom_call.1} parent=1 // pred_check_branch
      %80 = sbr.rel (0) target = $region33
    $region32: #{tpu_custom_call.1} parent=1 // pred_region
      _
    $region33: #{tpu_custom_call.1} parent=1 // pred_fallthru
      _
    // Predicated region
    $region34: #{tpu_custom_call.1} parent=1 // pred_check
      _
    $region35: #{tpu_custom_call.1} parent=1 // pred_check_branch
      %82 = sbr.rel (0) target = $region37
    $region36: #{tpu_custom_call.1} parent=1 // pred_region
      %83 = dma.done [#allocation3], 128
    $region37: #{tpu_custom_call.1} parent=1 // pred_fallthru
      _
    // Predicated region
    $region38: #{tpu_custom_call.1} parent=1 // pred_check
      _
    $region39: #{tpu_custom_call.1} parent=1 // pred_check_branch
      %85 = sbr.rel (0) target = $region41
    $region40: #{tpu_custom_call.1} parent=1 // pred_region
      %86 = dma.done [#allocation6], 1024
    $region41: #{tpu_custom_call.1} parent=1 // pred_fallthru
      _
    // Predicated region
    $region42: #{tpu_custom_call.1} parent=1 // pred_check
      _
    $region43: #{tpu_custom_call.1} parent=1 // pred_check_branch
      %88 = sbr.rel (0) target = $region45
    $region44: #{tpu_custom_call.1} parent=1 // pred_region
      %89 = dma.done [#allocation6], 1024
    $region45: #{tpu_custom_call.1} parent=1 // pred_fallthru
      _
    // Predicated region
    $region46: #{tpu_custom_call.1} parent=1 // pred_check
      _
    $region47: #{tpu_custom_call.1} parent=1 // pred_check_branch
      %91 = sbr.rel (0) target = $region49
    $region48: #{tpu_custom_call.1} parent=1 // pred_region
      %92 = dma.done [#allocation9], 1024
    $region49: #{tpu_custom_call.1} parent=1 // pred_fallthru
      _
    // Predicated region
    $region50: #{tpu_custom_call.1} parent=1 // pred_check
      _
    $region51: #{tpu_custom_call.1} parent=1 // pred_check_branch
      %94 = sbr.rel (0) target = $region53
    $region52: #{tpu_custom_call.1} parent=1 // pred_region
      %95 = dma.done [#allocation9], 1024
    $region53: #{tpu_custom_call.1} parent=1 // pred_fallthru
      _
    %v97 = vld [vmem:[#allocation2] sm:$0xff]
    %v98 = vlaneseq
    %v99 = vand.u32 %v98, 127
    %100 = vset.pattern.permute.xlu0 0
    %101 = vperm.xlu0 %100, %v97
    %v102 = vpop.permute.xlu0 %101
    %vm103 = vcmp.eq.s32.totalorder %v102, %v99
    %v104 = vsel %vm103, 1, 0
    %v105 = vcvt.s32.f32 %v104
    %v106 = vpack.c.bf16 %v105, %v105
    %v107 = vadd.bf16 %v106, 0
    %108 = vset.pattern.permute.xlu0 1
    %109 = vperm.xlu0 %108, %v97
    %v110 = vpop.permute.xlu0 %109
    %vm111 = vcmp.eq.s32.totalorder %v110, %v99
    %v112 = vsel %vm111, 1, 0
    %v113 = vcvt.s32.f32 %v112
    %v114 = vpack.c.bf16 %v113, %v113
    %v115 = vadd.bf16 %v107, %v114
    %116 = vset.pattern.permute.xlu0 2
    %117 = vperm.xlu0 %116, %v97
    %v118 = vpop.permute.xlu0 %117
    %vm119 = vcmp.eq.s32.totalorder %v118, %v99
    %v120 = vsel %vm119, 1, 0
    %v121 = vcvt.s32.f32 %v120
    %v122 = vpack.c.bf16 %v121, %v121
    %v123 = vadd.bf16 %v115, %v122
    %124 = vset.pattern.permute.xlu0 3
    %125 = vperm.xlu0 %124, %v97
    %v126 = vpop.permute.xlu0 %125
    %vm127 = vcmp.eq.s32.totalorder %v126, %v99
    %v128 = vsel %vm127, 1, 0
    %v129 = vcvt.s32.f32 %v128
    %v130 = vpack.c.bf16 %v129, %v129
    %v131 = vadd.bf16 %v123, %v130
    %132 = vset.pattern.permute.xlu0 4
    %133 = vperm.xlu0 %132, %v97
    %v134 = vpop.permute.xlu0 %133
    %vm135 = vcmp.eq.s32.totalorder %v134, %v99
    %v136 = vsel %vm135, 1, 0
    %v137 = vcvt.s32.f32 %v136
    %v138 = vpack.c.bf16 %v137, %v137
    %v139 = vadd.bf16 %v131, %v138
    %140 = vset.pattern.permute.xlu0 5
    %141 = vperm.xlu0 %140, %v97
    %v142 = vpop.permute.xlu0 %141
    %vm143 = vcmp.eq.s32.totalorder %v142, %v99
    %v144 = vsel %vm143, 1, 0
    %v145 = vcvt.s32.f32 %v144
    %v146 = vpack.c.bf16 %v145, %v145
    %v147 = vadd.bf16 %v139, %v146
    %148 = vset.pattern.permute.xlu0 6
    %149 = vperm.xlu0 %148, %v97
    %v150 = vpop.permute.xlu0 %149
    %vm151 = vcmp.eq.s32.totalorder %v150, %v99
    %v152 = vsel %vm151, 1, 0
    %v153 = vcvt.s32.f32 %v152
    %v154 = vpack.c.bf16 %v153, %v153
    %v155 = vadd.bf16 %v147, %v154
    %156 = vset.pattern.permute.xlu0 7
    %157 = vperm.xlu0 %156, %v97
    %v158 = vpop.permute.xlu0 %157
    %vm159 = vcmp.eq.s32.totalorder %v158, %v99
    %v160 = vsel %vm159, 1, 0
    %v161 = vcvt.s32.f32 %v160
    %v162 = vpack.c.bf16 %v161, %v161
    %v163 = vadd.bf16 %v155, %v162
    %v164 = vld [vmem:[#allocation5] sm:$0xf]
    %v165 = vld [vmem:[#allocation5 + $0x4] sm:$0xf]
    %v166 = vld [vmem:[#allocation5 + $0x8] sm:$0xf]
    %v167 = vld [vmem:[#allocation5 + $0xc] sm:$0xf]
    %v168 = vld [vmem:[#allocation5 + $0x10] sm:$0xf]
    %v169 = vld [vmem:[#allocation5 + $0x14] sm:$0xf]
    %v170 = vld [vmem:[#allocation5 + $0x18] sm:$0xf]
    %v171 = vld [vmem:[#allocation5 + $0x1c] sm:$0xf]
    %v172 = vld [vmem:[#allocation5 + $0x20] sm:$0xf]
    %v173 = vld [vmem:[#allocation5 + $0x24] sm:$0xf]
    %v174 = vld [vmem:[#allocation5 + $0x28] sm:$0xf]
    %v175 = vld [vmem:[#allocation5 + $0x2c] sm:$0xf]
    %v176 = vld [vmem:[#allocation5 + $0x30] sm:$0xf]
    %v177 = vld [vmem:[#allocation5 + $0x34] sm:$0xf]
    %v178 = vld [vmem:[#allocation5 + $0x38] sm:$0xf]
    %v179 = vld [vmem:[#allocation5 + $0x3c] sm:$0xf]
    %v196 = vunpack.c.l.b16 %v164
    %v197 = vunpack.c.l.b16 %v165
    %v198 = vunpack.c.l.b16 %v166
    %v199 = vunpack.c.l.b16 %v167
    %v200 = vunpack.c.l.b16 %v168
    %v201 = vunpack.c.l.b16 %v169
    %v202 = vunpack.c.l.b16 %v170
    %v203 = vunpack.c.l.b16 %v171
    %v204 = vunpack.c.l.b16 %v172
    %v205 = vunpack.c.l.b16 %v173
    %v206 = vunpack.c.l.b16 %v174
    %v207 = vunpack.c.l.b16 %v175
    %v208 = vunpack.c.l.b16 %v176
    %v209 = vunpack.c.l.b16 %v177
    %v210 = vunpack.c.l.b16 %v178
    %v211 = vunpack.c.l.b16 %v179
    %v212 = vpack.c.b16 %v197, %v196
    %v213 = vpack.c.b16 %v199, %v198
    %v214 = vpack.c.b16 %v201, %v200
    %v215 = vpack.c.b16 %v203, %v202
    %v216 = vpack.c.b16 %v205, %v204
    %v217 = vpack.c.b16 %v207, %v206
    %v218 = vpack.c.b16 %v209, %v208
    %v219 = vpack.c.b16 %v211, %v210
    %228 = vmatprep.subr.bf16.mxu0 0
    %229 = vmatpush1.bf16.msra.mxu0 %v212
    %230 = vmatprep.subr.bf16.mxu0 0
    %231 = vmatpush1.bf16.msra.mxu0 %v213
    %232 = vmatprep.subr.bf16.mxu0 0
    %233 = vmatpush1.bf16.msra.mxu0 %v214
    %234 = vmatprep.subr.bf16.mxu0 0
    %235 = vmatpush1.bf16.msra.mxu0 %v215
    %236 = vmatprep.subr.bf16.mxu0 0
    %237 = vmatpush1.bf16.msra.mxu0 %v216
    %238 = vmatprep.subr.bf16.mxu0 0
    %239 = vmatpush1.bf16.msra.mxu0 %v217
    %240 = vmatprep.subr.bf16.mxu0 0
    %241 = vmatpush1.bf16.msra.mxu0 %v218
    %242 = vmatprep.subr.bf16.mxu0 0
    %243 = vmatpush1.bf16.msra.mxu0 %v219
    %244 = vmatprep.subr.bf16.mxu0 0
    %245 = vmatpush1.bf16.msra.mxu0 0
    %246 = vmatprep.subr.bf16.mxu0 0
    %247 = vmatpush1.bf16.msra.mxu0 0
    %248 = vmatprep.subr.bf16.mxu0 0
    %249 = vmatpush1.bf16.msra.mxu0 0
    %250 = vmatprep.subr.bf16.mxu0 0
    %251 = vmatpush1.bf16.msra.mxu0 0
    %252 = vmatprep.subr.bf16.mxu0 0
    %253 = vmatpush1.bf16.msra.mxu0 0
    %254 = vmatprep.subr.bf16.mxu0 0
    %255 = vmatpush1.bf16.msra.mxu0 0
    %256 = vmatprep.subr.bf16.mxu0 0
    %257 = vmatpush1.bf16.msra.mxu0 0
    %258 = vmatprep.subr.bf16.mxu0 0
    %259 = vmatpush1.bf16.msra.mxu0 0
    %260 = vmatprep.mubr.bf16.mxu0 0
    %261 = vmatmul.mubr.bf16.gmra.mrb[0].mxu0 %v163
    %v262 = vpop.f32.mrb[0].mxu0
    %v263 = vadd.f32 0.0, %v262
    %v264 = vpop.f32.mrb[0].mxu0
    %v265 = vpop.f32.mrb[0].mxu0
    %v266 = vpop.f32.mrb[0].mxu0
    %267 = vdwg.mxu0
    %v268 = vtanh.pop %v263
    %v269 = vpack.c.bf16 %v268, %v268
    %v270 = vld [vmem:[#allocation7] sm:$0xf]
    %v271 = vld [vmem:[#allocation7 + $0x4] sm:$0xf]
    %v272 = vld [vmem:[#allocation7 + $0x8] sm:$0xf]
    %v273 = vld [vmem:[#allocation7 + $0xc] sm:$0xf]
    %v274 = vld [vmem:[#allocation7 + $0x10] sm:$0xf]
    %v275 = vld [vmem:[#allocation7 + $0x14] sm:$0xf]
    %v276 = vld [vmem:[#allocation7 + $0x18] sm:$0xf]
    %v277 = vld [vmem:[#allocation7 + $0x1c] sm:$0xf]
    %v278 = vld [vmem:[#allocation7 + $0x20] sm:$0xf]
    %v279 = vld [vmem:[#allocation7 + $0x24] sm:$0xf]
    %v280 = vld [vmem:[#allocation7 + $0x28] sm:$0xf]
    %v281 = vld [vmem:[#allocation7 + $0x2c] sm:$0xf]
    %v282 = vld [vmem:[#allocation7 + $0x30] sm:$0xf]
    %v283 = vld [vmem:[#allocation7 + $0x34] sm:$0xf]
    %v284 = vld [vmem:[#allocation7 + $0x38] sm:$0xf]
    %v285 = vld [vmem:[#allocation7 + $0x3c] sm:$0xf]
    %v286 = vld [vmem:[%s3] sm:$0x1]
    %v288 = vlaneseq
    %v289 = vshrl.u32 %v288, 7
    %v290 = vsub.s32 0, %v289
    %v291 = vrot.slane %v286, %v290
    %v309 = vunpack.c.l.b16 %v270
    %v310 = vunpack.c.l.b16 %v271
    %v311 = vunpack.c.l.b16 %v272
    %v312 = vunpack.c.l.b16 %v273
    %v313 = vunpack.c.l.b16 %v274
    %v314 = vunpack.c.l.b16 %v275
    %v315 = vunpack.c.l.b16 %v276
    %v316 = vunpack.c.l.b16 %v277
    %v317 = vunpack.c.l.b16 %v278
    %v318 = vunpack.c.l.b16 %v279
    %v319 = vunpack.c.l.b16 %v280
    %v320 = vunpack.c.l.b16 %v281
    %v321 = vunpack.c.l.b16 %v282
    %v322 = vunpack.c.l.b16 %v283
    %v323 = vunpack.c.l.b16 %v284
    %v324 = vunpack.c.l.b16 %v285
    %v325 = vpack.c.b16 %v310, %v309
    %v326 = vpack.c.b16 %v312, %v311
    %v327 = vpack.c.b16 %v314, %v313
    %v328 = vpack.c.b16 %v316, %v315
    %v329 = vpack.c.b16 %v318, %v317
    %v330 = vpack.c.b16 %v320, %v319
    %v331 = vpack.c.b16 %v322, %v321
    %v332 = vpack.c.b16 %v324, %v323
    %341 = vmatprep.subr.bf16.mxu0 0
    %342 = vmatpush1.bf16.msra.mxu0 %v325
    %343 = vmatprep.subr.bf16.mxu0 0
    %344 = vmatpush1.bf16.msra.mxu0 %v326
    %345 = vmatprep.subr.bf16.mxu0 0
    %346 = vmatpush1.bf16.msra.mxu0 %v327
    %347 = vmatprep.subr.bf16.mxu0 0
    %348 = vmatpush1.bf16.msra.mxu0 %v328
    %349 = vmatprep.subr.bf16.mxu0 0
    %350 = vmatpush1.bf16.msra.mxu0 %v329
    %351 = vmatprep.subr.bf16.mxu0 0
    %352 = vmatpush1.bf16.msra.mxu0 %v330
    %353 = vmatprep.subr.bf16.mxu0 0
    %354 = vmatpush1.bf16.msra.mxu0 %v331
    %355 = vmatprep.subr.bf16.mxu0 0
    %356 = vmatpush1.bf16.msra.mxu0 %v332
    %357 = vmatprep.subr.bf16.mxu0 0
    %358 = vmatpush1.bf16.msra.mxu0 0
    %359 = vmatprep.subr.bf16.mxu0 0
    %360 = vmatpush1.bf16.msra.mxu0 0
    %361 = vmatprep.subr.bf16.mxu0 0
    %362 = vmatpush1.bf16.msra.mxu0 0
    %363 = vmatprep.subr.bf16.mxu0 0
    %364 = vmatpush1.bf16.msra.mxu0 0
    %365 = vmatprep.subr.bf16.mxu0 0
    %366 = vmatpush1.bf16.msra.mxu0 0
    %367 = vmatprep.subr.bf16.mxu0 0
    %368 = vmatpush1.bf16.msra.mxu0 0
    %369 = vmatprep.subr.bf16.mxu0 0
    %370 = vmatpush1.bf16.msra.mxu0 0
    %371 = vmatprep.subr.bf16.mxu0 0
    %372 = vmatpush1.bf16.msra.mxu0 0
    %373 = vmatprep.mubr.bf16.mxu0 0
    %374 = vmatmul.mubr.bf16.gmra.mrb[0].mxu0 %v269
    %v375 = vpop.f32.mrb[0].mxu0
    %v376 = vadd.f32 %v291, %v375
    %v377 = vpop.f32.mrb[0].mxu0
    %v378 = vpop.f32.mrb[0].mxu0
    %v379 = vpop.f32.mrb[0].mxu0
    %380 = vdwg.mxu0
    %v381 = vtanh.pop %v376
    %v382 = vpack.c.bf16 %v381, %v381
    %v383 = vld [vmem:[#allocation8] sm:$0xf]
    %v384 = vld [vmem:[#allocation8 + $0x4] sm:$0xf]
    %v385 = vld [vmem:[#allocation8 + $0x8] sm:$0xf]
    %v386 = vld [vmem:[#allocation8 + $0xc] sm:$0xf]
    %v387 = vld [vmem:[#allocation8 + $0x10] sm:$0xf]
    %v388 = vld [vmem:[#allocation8 + $0x14] sm:$0xf]
    %v389 = vld [vmem:[#allocation8 + $0x18] sm:$0xf]
    %v390 = vld [vmem:[#allocation8 + $0x1c] sm:$0xf]
    %v391 = vld [vmem:[#allocation8 + $0x20] sm:$0xf]
    %v392 = vld [vmem:[#allocation8 + $0x24] sm:$0xf]
    %v393 = vld [vmem:[#allocation8 + $0x28] sm:$0xf]
    %v394 = vld [vmem:[#allocation8 + $0x2c] sm:$0xf]
    %v395 = vld [vmem:[#allocation8 + $0x30] sm:$0xf]
    %v396 = vld [vmem:[#allocation8 + $0x34] sm:$0xf]
    %v397 = vld [vmem:[#allocation8 + $0x38] sm:$0xf]
    %v398 = vld [vmem:[#allocation8 + $0x3c] sm:$0xf]
    %v399 = vld [vmem:[%s5] sm:$0x1]
    %v401 = vlaneseq
    %v402 = vshrl.u32 %v401, 7
    %v403 = vsub.s32 0, %v402
    %v404 = vrot.slane %v399, %v403
    %v422 = vunpack.c.l.b16 %v383
    %v423 = vunpack.c.l.b16 %v384
    %v424 = vunpack.c.l.b16 %v385
    %v425 = vunpack.c.l.b16 %v386
    %v426 = vunpack.c.l.b16 %v387
    %v427 = vunpack.c.l.b16 %v388
    %v428 = vunpack.c.l.b16 %v389
    %v429 = vunpack.c.l.b16 %v390
    %v430 = vunpack.c.l.b16 %v391
    %v431 = vunpack.c.l.b16 %v392
    %v432 = vunpack.c.l.b16 %v393
    %v433 = vunpack.c.l.b16 %v394
    %v434 = vunpack.c.l.b16 %v395
    %v435 = vunpack.c.l.b16 %v396
    %v436 = vunpack.c.l.b16 %v397
    %v437 = vunpack.c.l.b16 %v398
    %v438 = vpack.c.b16 %v423, %v422
    %v439 = vpack.c.b16 %v425, %v424
    %v440 = vpack.c.b16 %v427, %v426
    %v441 = vpack.c.b16 %v429, %v428
    %v442 = vpack.c.b16 %v431, %v430
    %v443 = vpack.c.b16 %v433, %v432
    %v444 = vpack.c.b16 %v435, %v434
    %v445 = vpack.c.b16 %v437, %v436
    %454 = vmatprep.subr.bf16.mxu0 0
    %455 = vmatpush1.bf16.msra.mxu0 %v438
    %456 = vmatprep.subr.bf16.mxu0 0
    %457 = vmatpush1.bf16.msra.mxu0 %v439
    %458 = vmatprep.subr.bf16.mxu0 0
    %459 = vmatpush1.bf16.msra.mxu0 %v440
    %460 = vmatprep.subr.bf16.mxu0 0
    %461 = vmatpush1.bf16.msra.mxu0 %v441
    %462 = vmatprep.subr.bf16.mxu0 0
    %463 = vmatpush1.bf16.msra.mxu0 %v442
    %464 = vmatprep.subr.bf16.mxu0 0
    %465 = vmatpush1.bf16.msra.mxu0 %v443
    %466 = vmatprep.subr.bf16.mxu0 0
    %467 = vmatpush1.bf16.msra.mxu0 %v444
    %468 = vmatprep.subr.bf16.mxu0 0
    %469 = vmatpush1.bf16.msra.mxu0 %v445
    %470 = vmatprep.subr.bf16.mxu0 0
    %471 = vmatpush1.bf16.msra.mxu0 0
    %472 = vmatprep.subr.bf16.mxu0 0
    %473 = vmatpush1.bf16.msra.mxu0 0
    %474 = vmatprep.subr.bf16.mxu0 0
    %475 = vmatpush1.bf16.msra.mxu0 0
    %476 = vmatprep.subr.bf16.mxu0 0
    %477 = vmatpush1.bf16.msra.mxu0 0
    %478 = vmatprep.subr.bf16.mxu0 0
    %479 = vmatpush1.bf16.msra.mxu0 0
    %480 = vmatprep.subr.bf16.mxu0 0
    %481 = vmatpush1.bf16.msra.mxu0 0
    %482 = vmatprep.subr.bf16.mxu0 0
    %483 = vmatpush1.bf16.msra.mxu0 0
    %484 = vmatprep.subr.bf16.mxu0 0
    %485 = vmatpush1.bf16.msra.mxu0 0
    %486 = vmatprep.mubr.bf16.mxu0 0
    %487 = vmatmul.mubr.bf16.gmra.mrb[0].mxu0 %v382
    %v488 = vpop.f32.mrb[0].mxu0
    %v489 = vadd.f32 %v404, %v488
    %v490 = vpop.f32.mrb[0].mxu0
    %v491 = vpop.f32.mrb[0].mxu0
    %v492 = vpop.f32.mrb[0].mxu0
    %493 = vdwg.mxu0
    %v494 = vtanh.pop %v489
    %v495 = vpack.c.bf16 %v494, %v494
    %v496 = vld [vmem:[#allocation10] sm:$0xf]
    %v497 = vld [vmem:[#allocation10 + $0x4] sm:$0xf]
    %v498 = vld [vmem:[#allocation10 + $0x8] sm:$0xf]
    %v499 = vld [vmem:[#allocation10 + $0xc] sm:$0xf]
    %v500 = vld [vmem:[#allocation10 + $0x10] sm:$0xf]
    %v501 = vld [vmem:[#allocation10 + $0x14] sm:$0xf]
    %v502 = vld [vmem:[#allocation10 + $0x18] sm:$0xf]
    %v503 = vld [vmem:[#allocation10 + $0x1c] sm:$0xf]
    %v504 = vld [vmem:[#allocation10 + $0x20] sm:$0xf]
    %v505 = vld [vmem:[#allocation10 + $0x24] sm:$0xf]
    %v506 = vld [vmem:[#allocation10 + $0x28] sm:$0xf]
    %v507 = vld [vmem:[#allocation10 + $0x2c] sm:$0xf]
    %v508 = vld [vmem:[#allocation10 + $0x30] sm:$0xf]
    %v509 = vld [vmem:[#allocation10 + $0x34] sm:$0xf]
    %v510 = vld [vmem:[#allocation10 + $0x38] sm:$0xf]
    %v511 = vld [vmem:[#allocation10 + $0x3c] sm:$0xf]
    %v512 = vld [vmem:[%s7] sm:$0x1]
    %v514 = vlaneseq
    %v515 = vshrl.u32 %v514, 7
    %v516 = vsub.s32 0, %v515
    %v517 = vrot.slane %v512, %v516
    %v535 = vunpack.c.l.b16 %v496
    %v536 = vunpack.c.l.b16 %v497
    %v537 = vunpack.c.l.b16 %v498
    %v538 = vunpack.c.l.b16 %v499
    %v539 = vunpack.c.l.b16 %v500
    %v540 = vunpack.c.l.b16 %v501
    %v541 = vunpack.c.l.b16 %v502
    %v542 = vunpack.c.l.b16 %v503
    %v543 = vunpack.c.l.b16 %v504
    %v544 = vunpack.c.l.b16 %v505
    %v545 = vunpack.c.l.b16 %v506
    %v546 = vunpack.c.l.b16 %v507
    %v547 = vunpack.c.l.b16 %v508
    %v548 = vunpack.c.l.b16 %v509
    %v549 = vunpack.c.l.b16 %v510
    %v550 = vunpack.c.l.b16 %v511
    %v551 = vpack.c.b16 %v536, %v535
    %v552 = vpack.c.b16 %v538, %v537
    %v553 = vpack.c.b16 %v540, %v539
    %v554 = vpack.c.b16 %v542, %v541
    %v555 = vpack.c.b16 %v544, %v543
    %v556 = vpack.c.b16 %v546, %v545
    %v557 = vpack.c.b16 %v548, %v547
    %v558 = vpack.c.b16 %v550, %v549
    %567 = vmatprep.subr.bf16.mxu0 0
    %568 = vmatpush1.bf16.msra.mxu0 %v551
    %569 = vmatprep.subr.bf16.mxu0 0
    %570 = vmatpush1.bf16.msra.mxu0 %v552
    %571 = vmatprep.subr.bf16.mxu0 0
    %572 = vmatpush1.bf16.msra.mxu0 %v553
    %573 = vmatprep.subr.bf16.mxu0 0
    %574 = vmatpush1.bf16.msra.mxu0 %v554
    %575 = vmatprep.subr.bf16.mxu0 0
    %576 = vmatpush1.bf16.msra.mxu0 %v555
    %577 = vmatprep.subr.bf16.mxu0 0
    %578 = vmatpush1.bf16.msra.mxu0 %v556
    %579 = vmatprep.subr.bf16.mxu0 0
    %580 = vmatpush1.bf16.msra.mxu0 %v557
    %581 = vmatprep.subr.bf16.mxu0 0
    %582 = vmatpush1.bf16.msra.mxu0 %v558
    %583 = vmatprep.subr.bf16.mxu0 0
    %584 = vmatpush1.bf16.msra.mxu0 0
    %585 = vmatprep.subr.bf16.mxu0 0
    %586 = vmatpush1.bf16.msra.mxu0 0
    %587 = vmatprep.subr.bf16.mxu0 0
    %588 = vmatpush1.bf16.msra.mxu0 0
    %589 = vmatprep.subr.bf16.mxu0 0
    %590 = vmatpush1.bf16.msra.mxu0 0
    %591 = vmatprep.subr.bf16.mxu0 0
    %592 = vmatpush1.bf16.msra.mxu0 0
    %593 = vmatprep.subr.bf16.mxu0 0
    %594 = vmatpush1.bf16.msra.mxu0 0
    %595 = vmatprep.subr.bf16.mxu0 0
    %596 = vmatpush1.bf16.msra.mxu0 0
    %597 = vmatprep.subr.bf16.mxu0 0
    %598 = vmatpush1.bf16.msra.mxu0 0
    %599 = vmatprep.mubr.bf16.mxu0 0
    %600 = vmatmul.mubr.bf16.gmra.mrb[0].mxu0 %v495
    %v601 = vpop.f32.mrb[0].mxu0
    %v602 = vadd.f32 %v517, %v601
    %v603 = vpop.f32.mrb[0].mxu0
    %v604 = vpop.f32.mrb[0].mxu0
    %v605 = vpop.f32.mrb[0].mxu0
    %606 = vdwg.mxu0
    %607 = vmax.xlane.f32.xlu0 %v602
    %v608 = vpop.xlane.xlu0 %607
    %v609 = vsub.f32 %v602, %v608
    %v610 = vmul.f32 %v609, 1.442695
    %v611 = vpow.pop %v610
    %612 = vadd.xlane.f32.xlu0 %v611
    %v613 = vpop.xlane.xlu0 %612
    %v614 = vrcp.pop %v613
    %v615 = vmul.f32 %v611, %v614
    %616 = vst [vmem:[#allocation11] sm:$0xff] %v615
    // Predicated region
    $region54: #{tpu_custom_call.1} parent=1 // pred_check
      _
    $region55: #{tpu_custom_call.1} parent=1 // pred_check_branch
      %618 = sbr.rel (0) target = $region57
    $region56: #{tpu_custom_call.1} parent=1 // pred_region
      %s620 = ssub.s32 128, 128
      %621 = vsyncadd [#allocation4], %s620
      %s623 = sshll.u32 [#allocation11], 4
      %s624 = int_to_ptr.vmem [resolvable:$true] %s623
      %626 = dma.vmem_to_hbm [thread:$0]  %s624, 128, %s8, [#allocation4]
    $region57: #{tpu_custom_call.1} parent=1 // pred_fallthru
      _
    // Predicated region
    $region58: #{tpu_custom_call.1} parent=1 // pred_check
      _
    $region59: #{tpu_custom_call.1} parent=1 // pred_check_branch
      %628 = sbr.rel (0) target = $region61
    $region60: #{tpu_custom_call.1} parent=1 // pred_region
      %629 = dma.done [#allocation4], 128
    $region61: #{tpu_custom_call.1} parent=1 // pred_fallthru
      _
    %630 = vsyncpa [#allocation3], 1
    %631 = vsyncpa [#allocation6], 1
    %632 = vsyncpa [#allocation9], 1
    %633 = vsyncpa [#allocation4], 1

</llo_original>
